<compile_context>
chip_gen: v5e
topology: v5e:2x2
jax: 0.10.0
libtpu: 0.0.40
codegen_flags: <defaults>
</compile_context>

<pallas_src>
import functools

import jax
import jax.numpy as jnp
from jax.experimental import pallas as pl
from jax.experimental.pallas import tpu as pltpu

# Problem sizes (small, consistent with a Conv1d residual block).
N = 2       # batch
C = 4       # channels in/out of the residual block
H = 8       # hidden channels inside the block
T = 16      # input time steps
K = 3       # kernel size of the first conv (valid padding)
T_OUT = T - (K - 1)   # 14


def _gelu_tanh(x):
    # nn.GELU(approximate='tanh')
    c = 0.7978845608028654  # sqrt(2/pi)
    return 0.5 * x * (1.0 + jnp.tanh(c * (x + 0.044715 * x * x * x)))


def residual1d_kernel(x2_ref, w1f_ref, b1_ref, w2_ref, b2_ref, o_ref, *,
                      res_row0, res_rows):
    """Single invocation (grid=()) over the whole problem.

    x2_ref  : (K*C, NT_PAD)  im2col of the RAW input, lane axis padded to >=128
              x2[dk*C + c, n*T_OUT + t] = x[n, c, t + dk]
    w1f_ref : (H, K*C)       conv1 weights, taps fused: w1f[h, dk*C+c] = w1[h, c, dk]
    b1_ref  : (H, 1)         conv1 bias
    w2_ref  : (C, H)         conv2 (1x1) weights
    b2_ref  : (C, 1)         conv2 bias
    o_ref   : (C, NT_PAD)    lane-dense output (padding cropped in the wrapper)
    """
    x2 = x2_ref[...]                                   # raw (pre-GELU) im2col
    a = _gelu_tanh(x2)                                 # GELU (elementwise -> commutes with im2col)

    # Conv1d(C -> H, k=K, valid): ONE fused matmul over the K*C contraction,
    # RHS lane dimension = 128 (batch*time flattened + padded).
    h = jnp.dot(w1f_ref[...], a, preferred_element_type=jnp.float32) + b1_ref[...]
    h = _gelu_tanh(h)                                  # (H, NT_PAD)

    # Conv1d(H -> C, k=1): plain channel matmul.
    y = jnp.dot(w2_ref[...], h, preferred_element_type=jnp.float32) + b2_ref[...]

    # Residual: the center-cropped raw x (PyTorch's x[..., p//2 : -(p//2+p%2)])
    # is exactly tap-row-block `p//2` of the im2col matrix — no extra input.
    res = x2[res_row0:res_row0 + res_rows, :]          # (C, NT_PAD)

    o_ref[...] = (y + res).astype(o_ref.dtype)         # full-width 128-lane store


@jax.jit
def residual1d(x, w1, b1, w2, b2):
    """x: (N, C, T); w1: (H, C, K) [torch Conv1d(C,H,K).weight]; b1: (H,);
    w2: (C, H) [torch Conv1d(H,C,1).weight squeezed]; b2: (C,).
    Returns (N, C, T_OUT)."""
    n, c, t = x.shape
    h, _, k = w1.shape
    t_out = t - (k - 1)
    nt = n * t_out
    nt_pad = 128 * pl.cdiv(nt, 128)          # lane-dense width (>= 128)
    lo = (t - t_out) // 2                    # PyTorch center-crop start (p // 2)

    # ---- wrapper-side layout plumbing only (no arithmetic) ----
    # im2col of the RAW input, batch*time flattened onto lanes, padded to 128.
    cols = jnp.stack([x[:, :, dk:dk + t_out] for dk in range(k)], axis=0)   # (K, N, C, T_OUT)
    x2 = jnp.transpose(cols, (0, 2, 1, 3)).reshape(k * c, nt)               # (K*C, N*T_OUT)
    x2 = jnp.pad(x2, ((0, 0), (0, nt_pad - nt)))                            # (K*C, NT_PAD)
    # Fuse the K taps of conv1 into a single (H, K*C) weight matrix.
    w1f = jnp.transpose(w1, (0, 2, 1)).reshape(h, k * c)                    # (H, K*C)

    kernel = functools.partial(residual1d_kernel, res_row0=lo * c, res_rows=c)
    vmem = pl.BlockSpec(memory_space=pltpu.MemorySpace.VMEM)
    out_padded = pl.pallas_call(
        kernel,
        out_shape=jax.ShapeDtypeStruct((c, nt_pad), x.dtype),
        in_specs=[vmem, vmem, vmem, vmem, vmem],
        out_specs=vmem,
    )(x2, w1f, b1.reshape(h, 1), w2, b2.reshape(c, 1))

    # Crop the lane padding and restore (N, C, T_OUT).
    return out_padded[:, :nt].reshape(c, n, t_out).transpose(1, 0, 2)


def residual1d_ref(x, w1, b1, w2, b2):
    """Pure-JAX reference of the same forward pass (torch weight layout)."""
    a = _gelu_tanh(x)                                       # (N, C, T)
    k = w1.shape[-1]
    t_out = x.shape[-1] - (k - 1)
    acc = jnp.zeros((x.shape[0], w1.shape[0], t_out), jnp.float32)
    for dk in range(k):
        acc = acc + jnp.einsum("hc,nct->nht", w1[:, :, dk], a[:, :, dk:dk + t_out])
    hh = _gelu_tanh(acc + b1[None, :, None])
    y = jnp.einsum("ch,nht->nct", w2, hh) + b2[None, :, None]
    p = x.shape[-1] - t_out
    return y + x[:, :, p // 2: p // 2 + t_out]


if __name__ == "__main__":
    key = jax.random.PRNGKey(0)
    kx, k1, kb1, k2, kb2 = jax.random.split(key, 5)

    x = jax.random.normal(kx, (N, C, T), dtype=jnp.float32)
    # Conv1d(C, H, K).weight is (H, C, K); Conv1d(H, C, 1).weight squeezed to (C, H).
    w1 = 0.1 * jax.random.normal(k1, (H, C, K), dtype=jnp.float32)
    b1 = 0.1 * jax.random.normal(kb1, (H,), dtype=jnp.float32)
    w2 = 0.1 * jax.random.normal(k2, (C, H), dtype=jnp.float32)
    b2 = 0.1 * jax.random.normal(kb2, (C,), dtype=jnp.float32)

    out = jax.block_until_ready(residual1d(x, w1, b1, w2, b2))
    ref = residual1d_ref(x, w1, b1, w2, b2)

    assert out.shape == (N, C, T_OUT), out.shape
    assert jnp.allclose(out, ref, atol=1e-3, rtol=1e-3), "mismatch vs reference"
    print("KERNEL_OK")
</pallas_src>

<mosaic_0001>
module attributes {stable_mosaic.version = 11 : i64} {
  func.func @residual1d_kernel(%arg0: memref<12x128xf32, #tpu.memory_space<vmem>>, %arg1: memref<8x12xf32, #tpu.memory_space<vmem>>, %arg2: memref<8x1xf32, #tpu.memory_space<vmem>>, %arg3: memref<4x8xf32, #tpu.memory_space<vmem>>, %arg4: memref<4x1xf32, #tpu.memory_space<vmem>>, %arg5: memref<4x128xf32, #tpu.memory_space<vmem>>) attributes {dimension_semantics = [], scalar_prefetch = 0 : i64, scratch_operands = 0 : i64, tpu.core_type = #tpu.core_type<tc>} {
    %c0 = arith.constant 0 : index
    %c0_0 = arith.constant 0 : index
    %0 = vector.load %arg0[%c0, %c0_0] : memref<12x128xf32, #tpu.memory_space<vmem>>, vector<12x128xf32>
    %cst = arith.constant 5.000000e-01 : f32
    %1 = vector.broadcast %cst : f32 to vector<12x128xf32>
    %2 = arith.mulf %1, %0 : vector<12x128xf32>
    %cst_1 = arith.constant 4.471500e-02 : f32
    %3 = vector.broadcast %cst_1 : f32 to vector<12x128xf32>
    %4 = arith.mulf %3, %0 : vector<12x128xf32>
    %5 = arith.mulf %4, %0 : vector<12x128xf32>
    %6 = arith.mulf %5, %0 : vector<12x128xf32>
    %7 = arith.addf %0, %6 : vector<12x128xf32>
    %cst_2 = arith.constant 0.797884583 : f32
    %8 = vector.broadcast %cst_2 : f32 to vector<12x128xf32>
    %9 = arith.mulf %8, %7 : vector<12x128xf32>
    %10 = math.tanh %9 : vector<12x128xf32>
    %cst_3 = arith.constant 1.000000e+00 : f32
    %11 = vector.broadcast %cst_3 : f32 to vector<12x128xf32>
    %12 = arith.addf %11, %10 : vector<12x128xf32>
    %13 = arith.mulf %2, %12 : vector<12x128xf32>
    %c0_4 = arith.constant 0 : index
    %c0_5 = arith.constant 0 : index
    %14 = vector.load %arg1[%c0_4, %c0_5] : memref<8x12xf32, #tpu.memory_space<vmem>>, vector<8x12xf32>
    %cst_6 = arith.constant dense<0.000000e+00> : vector<8x128xf32>
    %15 = tpu.matmul %14, %13, %cst_6 {dimension_numbers = #tpu.dot_dimension_numbers<[1], [0], [0], [1], [0, 0, 1, 1], [], []>} : vector<8x12xf32>, vector<12x128xf32>, vector<8x128xf32> -> vector<8x128xf32>
    %c0_7 = arith.constant 0 : index
    %c0_8 = arith.constant 0 : index
    %16 = vector.load %arg2[%c0_7, %c0_8] : memref<8x1xf32, #tpu.memory_space<vmem>>, vector<8x1xf32>
    %17 = vector.broadcast %16 : vector<8x1xf32> to vector<8x128xf32>
    %18 = arith.addf %15, %17 : vector<8x128xf32>
    %cst_9 = arith.constant 5.000000e-01 : f32
    %19 = vector.broadcast %cst_9 : f32 to vector<8x128xf32>
    %20 = arith.mulf %19, %18 : vector<8x128xf32>
    %cst_10 = arith.constant 4.471500e-02 : f32
    %21 = vector.broadcast %cst_10 : f32 to vector<8x128xf32>
    %22 = arith.mulf %21, %18 : vector<8x128xf32>
    %23 = arith.mulf %22, %18 : vector<8x128xf32>
    %24 = arith.mulf %23, %18 : vector<8x128xf32>
    %25 = arith.addf %18, %24 : vector<8x128xf32>
    %cst_11 = arith.constant 0.797884583 : f32
    %26 = vector.broadcast %cst_11 : f32 to vector<8x128xf32>
    %27 = arith.mulf %26, %25 : vector<8x128xf32>
    %28 = math.tanh %27 : vector<8x128xf32>
    %cst_12 = arith.constant 1.000000e+00 : f32
    %29 = vector.broadcast %cst_12 : f32 to vector<8x128xf32>
    %30 = arith.addf %29, %28 : vector<8x128xf32>
    %31 = arith.mulf %20, %30 : vector<8x128xf32>
    %c0_13 = arith.constant 0 : index
    %c0_14 = arith.constant 0 : index
    %32 = vector.load %arg3[%c0_13, %c0_14] : memref<4x8xf32, #tpu.memory_space<vmem>>, vector<4x8xf32>
    %cst_15 = arith.constant dense<0.000000e+00> : vector<4x128xf32>
    %33 = tpu.matmul %32, %31, %cst_15 {dimension_numbers = #tpu.dot_dimension_numbers<[1], [0], [0], [1], [0, 0, 1, 1], [], []>} : vector<4x8xf32>, vector<8x128xf32>, vector<4x128xf32> -> vector<4x128xf32>
    %c0_16 = arith.constant 0 : index
    %c0_17 = arith.constant 0 : index
    %34 = vector.load %arg4[%c0_16, %c0_17] : memref<4x1xf32, #tpu.memory_space<vmem>>, vector<4x1xf32>
    %35 = vector.broadcast %34 : vector<4x1xf32> to vector<4x128xf32>
    %36 = arith.addf %33, %35 : vector<4x128xf32>
    %37 = vector.extract_strided_slice %0 {offsets = [4, 0], sizes = [4, 128], strides = [1, 1]} : vector<12x128xf32> to vector<4x128xf32>
    %38 = arith.addf %36, %37 : vector<4x128xf32>
    %c0_18 = arith.constant 0 : index
    %c0_19 = arith.constant 0 : index
    %39 = vector.load %arg5[%c0_18, %c0_19] : memref<4x128xf32, #tpu.memory_space<vmem>>, vector<4x128xf32>
    tpu.vector_store %arg5[%c0_18, %c0_19], %38 {strides = array<i32>} : memref<4x128xf32, #tpu.memory_space<vmem>>, vector<4x128xf32>,
    return
  }
}

</mosaic_0001>

<llo_original>
// kernel: residual1d.1
$region0: #{residual1d.1}
  #allocation0 [shape = 'u32[]', space=smem, size = 0x4, offset = 0x4, fixed_abs, tag = 'smem constant byte address 0x4 - core index']
  #allocation1 [shape = 'u32[72,128]{1,0:T(1,128)}', space=vmem, size = 0x9000, scoped, tag = 'internal scratch']
  %s0 = inlined_call_operand.vmem [shape: f32[12,128], index: 0, kind: input, shape index: {}]
  %s1 = inlined_call_operand.vmem [shape: f32[8,12], index: 1, kind: input, shape index: {}]
  %s2 = inlined_call_operand.vmem [shape: f32[8,1], index: 2, kind: input, shape index: {}]
  %s3 = inlined_call_operand.vmem [shape: f32[4,8], index: 3, kind: input, shape index: {}]
  %s4 = inlined_call_operand.vmem [shape: f32[4,1], index: 4, kind: input, shape index: {}]
  %s5 = inlined_call_operand.vmem [shape: f32[4,128], index: 5, kind: output, shape index: {}]
  %s6 = sld [smem:[#allocation0]]
  $region30: #{residual1d.1} parent=0
    _
  %s8 = ssub.s32 1, %s6
  %s9 = scalar_select 0, %s8, %s6
  // Predicated region
  $region2: #{residual1d.1} parent=0 // pred_check
    _
  $region3: #{residual1d.1} parent=0 // pred_check_branch
    %11 = sbr.rel (0) target = $region5
  $region4: #{residual1d.1} parent=0 // pred_region
    _
  $region5: #{residual1d.1} parent=0 // pred_fallthru
    _
  // Predicated region
  $region6: #{residual1d.1} parent=0 // pred_check
    _
  $region7: #{residual1d.1} parent=0 // pred_check_branch
    %13 = sbr.rel (0) target = $region9
  $region8: #{residual1d.1} parent=0 // pred_region
    _
  $region9: #{residual1d.1} parent=0 // pred_fallthru
    _
  // Predicated region
  $region10: #{residual1d.1} parent=0 // pred_check
    _
  $region11: #{residual1d.1} parent=0 // pred_check_branch
    %15 = sbr.rel (0) target = $region13
  $region12: #{residual1d.1} parent=0 // pred_region
    _
  $region13: #{residual1d.1} parent=0 // pred_fallthru
    _
  // Predicated region
  $region14: #{residual1d.1} parent=0 // pred_check
    _
  $region15: #{residual1d.1} parent=0 // pred_check_branch
    %17 = sbr.rel (0) target = $region17
  $region16: #{residual1d.1} parent=0 // pred_region
    _
  $region17: #{residual1d.1} parent=0 // pred_fallthru
    _
  // Predicated region
  $region18: #{residual1d.1} parent=0 // pred_check
    _
  $region19: #{residual1d.1} parent=0 // pred_check_branch
    %19 = sbr.rel (0) target = $region21
  $region20: #{residual1d.1} parent=0 // pred_region
    _
  $region21: #{residual1d.1} parent=0 // pred_fallthru
    _
  %v20 = vld [vmem:[%s0] sm:$0xff]
  %v21 = vld [vmem:[%s0 + $0x8] sm:$0xf]
  %v22 = vmul.f32 %v20, 0.5
  %v23 = vmul.f32 %v21, 0.5
  %v24 = vmul.f32 %v20, 0.044715
  %v25 = vmul.f32 %v21, 0.044715
  %v26 = vmul.f32 %v24, %v20
  %v27 = vmul.f32 %v25, %v21
  %v28 = vmul.f32 %v26, %v20
  %v29 = vmul.f32 %v27, %v21
  %v30 = vadd.f32 %v20, %v28
  %v31 = vadd.f32 %v21, %v29
  %v32 = vmul.f32 %v30, 0.7978846
  %v33 = vmul.f32 %v31, 0.7978846
  %v34 = vtanh.pop %v32
  %v35 = vtanh.pop %v33
  %v36 = vadd.f32 %v34, 1.0
  %v37 = vadd.f32 %v35, 1.0
  %v38 = vmul.f32 %v22, %v36
  %v39 = vmul.f32 %v23, %v37
  %v40 = vld [vmem:[%s1] sm:$0xff]
  %v41 = vld [vmem:[%s2] sm:$0xff]
  %43 = vset.pattern.permute.xlu0 0
  %44 = vperm.xlu0 %43, %v41
  %v45 = vpop.permute.xlu0 %44
  %vm47 = vcmask 97280
  %v49 = vsel %vm47, %v40, 0
  %vm51 = vcmask 1043456
  %v53 = vsel %vm51, %v39, 0
  %55 = vmatpush.msra.mxu0 0.0
  %56 = vmatpush.msra.mxu0 0.0
  %57 = vmatpush.msra.mxu0 0.0
  %58 = vmatpush.msra.mxu0 0.0
  %59 = vmatpush.msra.mxu0 0.0
  %60 = vmatpush.msra.mxu0 0.0
  %61 = vmatpush.msra.mxu0 0.0
  %62 = vmatpush.msra.mxu0 0.0
  %63 = vmatpush.msra.mxu0 0.0
  %64 = vmatpush.msra.mxu0 0.0
  %65 = vmatpush.msra.mxu0 0.0
  %66 = vmatpush.msra.mxu0 0.0
  %67 = vmatpush.msra.mxu0 0.0
  %68 = vmatpush.msra.mxu0 0.0
  %69 = vmatpush.msra.mxu0 %v53
  %70 = vmatpush.msra.mxu0 %v38
  %71 = vmatmul.f32.gmra.mxu0 %v49
  %v72 = vpop.f32.mrf.mxu0
  %v73 = vadd.f32 %v45, %v72
  %74 = vdwg.mxu0
  %v75 = vmul.f32 %v73, 0.5
  %v76 = vmul.f32 %v73, 0.044715
  %v77 = vmul.f32 %v76, %v73
  %v78 = vmul.f32 %v77, %v73
  %v79 = vadd.f32 %v73, %v78
  %v80 = vmul.f32 %v79, 0.7978846
  %v81 = vtanh.pop %v80
  %v82 = vadd.f32 %v81, 1.0
  %v83 = vmul.f32 %v75, %v82
  %v84 = vld [vmem:[%s3] sm:$0xf]
  %v85 = vld [vmem:[%s4] sm:$0xf]
  %87 = vset.pattern.permute.xlu0 0
  %88 = vperm.xlu0 %87, %v85
  %v89 = vpop.permute.xlu0 %88
  %vm91 = vcmask 64512
  %v93 = vsel %vm91, %v84, 0
  %95 = vmatpush.msra.mxu0 0.0
  %96 = vmatpush.msra.mxu0 0.0
  %97 = vmatpush.msra.mxu0 0.0
  %98 = vmatpush.msra.mxu0 0.0
  %99 = vmatpush.msra.mxu0 0.0
  %100 = vmatpush.msra.mxu0 0.0
  %101 = vmatpush.msra.mxu0 0.0
  %102 = vmatpush.msra.mxu0 0.0
  %103 = vmatpush.msra.mxu0 0.0
  %104 = vmatpush.msra.mxu0 0.0
  %105 = vmatpush.msra.mxu0 0.0
  %106 = vmatpush.msra.mxu0 0.0
  %107 = vmatpush.msra.mxu0 0.0
  %108 = vmatpush.msra.mxu0 0.0
  %109 = vmatpush.msra.mxu0 0.0
  %110 = vmatpush.msra.mxu0 %v83
  %111 = vmatmul.f32.gmra.mxu0 %v93
  %v112 = vpop.f32.mrf.mxu0
  %v113 = vadd.f32 %v89, %v112
  %114 = vdwg.mxu0
  %v116 = vrot.slane %v20, 4
  %v118 = vadd.f32 %v113, %v116
  %119 = vst [vmem:[%s5] sm:$0xf] %v118
  // Predicated region
  $region22: #{residual1d.1} parent=0 // pred_check
    _
  $region23: #{residual1d.1} parent=0 // pred_check_branch
    %121 = sbr.rel (0) target = $region25
  $region24: #{residual1d.1} parent=0 // pred_region
    _
  $region25: #{residual1d.1} parent=0 // pred_fallthru
    _
  // Predicated region
  $region26: #{residual1d.1} parent=0 // pred_check
    _
  $region27: #{residual1d.1} parent=0 // pred_check_branch
    %123 = sbr.rel (0) target = $region29
  $region28: #{residual1d.1} parent=0 // pred_region
    _
  $region29: #{residual1d.1} parent=0 // pred_fallthru
    _

</llo_original>
